<compile_context>
chip_gen: v5e
topology: v5e:2x2
jax: 0.10.0
libtpu: 0.0.40
codegen_flags: <defaults>
</compile_context>

<pallas_src>
import jax
import jax.numpy as jnp
from jax.experimental import pallas as pl
from jax.experimental.pallas import tpu as pltpu

_LANES = 128
_TARGET_BLOCK_BYTES = 2 * 1024 * 1024  # ~2 MiB per block


def _copy_kernel(x_ref, o_ref):
    # Pure copy: the RGB->BGR permutation is done by the input index_map.
    o_ref[...] = x_ref[...]


def rgb2bgr(x: jax.Array) -> jax.Array:
    """out[:, c] = x[:, C-1-c]  (i.e. x[:, [2, 1, 0]] for C == 3)."""
    B, C, H, W = x.shape
    HW = H * W

    if HW % _LANES == 0:
        # Lane-dense fast path: flatten spatial to (rows, 128).
        R = HW // _LANES
        xr = x.reshape(B, C, R, _LANES)

        bytes_per_row = _LANES * x.dtype.itemsize
        target_rows = max(8, _TARGET_BLOCK_BYTES // bytes_per_row)
        if R <= target_rows:
            tr = R                        # whole channel plane in one tile
        else:
            tr = (target_rows // 8) * 8   # sublane-aligned spatial tile

        grid = (B, C, pl.cdiv(R, tr))

        out = pl.pallas_call(
            _copy_kernel,
            out_shape=jax.ShapeDtypeStruct((B, C, R, _LANES), x.dtype),
            grid_spec=pltpu.PrefetchScalarGridSpec(
                num_scalar_prefetch=0,
                grid=grid,
                in_specs=[pl.BlockSpec(
                    (None, None, tr, _LANES),
                    lambda b, c, t: (b, C - 1 - c, t, 0))],
                out_specs=pl.BlockSpec(
                    (None, None, tr, _LANES),
                    lambda b, c, t: (b, c, t, 0)),
            ),
            compiler_params=pltpu.CompilerParams(
                dimension_semantics=("parallel", "parallel", "parallel"),
                vmem_limit_bytes=32 * 1024 * 1024,
            ),
        )(xr)
        return out.reshape(B, C, H, W)

    # Fallback (H*W not a multiple of 128): one full (H, W) plane per grid
    # step. Last two block dims equal the full array dims, so the (8, 128)
    # constraint is satisfied for any image size; flip stays in the index_map.
    return pl.pallas_call(
        _copy_kernel,
        out_shape=jax.ShapeDtypeStruct((B, C, H, W), x.dtype),
        grid_spec=pltpu.PrefetchScalarGridSpec(
            num_scalar_prefetch=0,
            grid=(B, C),
            in_specs=[pl.BlockSpec(
                (None, None, H, W), lambda b, c: (b, C - 1 - c, 0, 0))],
            out_specs=pl.BlockSpec(
                (None, None, H, W), lambda b, c: (b, c, 0, 0)),
        ),
        compiler_params=pltpu.CompilerParams(
            dimension_semantics=("parallel", "parallel"),
        ),
    )(x)


if __name__ == "__main__":
    key = jax.random.PRNGKey(0)
    # RGB image batch: B=2, C=3 (RGB), H=W=16  (H*W = 256 -> lane-dense path)
    x = jax.random.normal(key, (2, 3, 16, 16), dtype=jnp.float32)

    out = jax.block_until_ready(rgb2bgr(x))

    # Reference: plain JAX channel flip (same as torch indexing [2, 1, 0]).
    ref = x[:, ::-1, :, :]
    assert out.shape == x.shape and out.dtype == x.dtype
    assert jnp.array_equal(out, ref), "mismatch vs reference"

    print("KERNEL_OK")
</pallas_src>

<mosaic_0001>
module attributes {stable_mosaic.version = 11 : i64} {
  func.func @_copy_kernel(%arg0: i32, %arg1: i32, %arg2: i32, %arg3: memref<1x1x2x128xf32, #tpu.memory_space<vmem>>, %arg4: memref<1x1x2x128xf32, #tpu.memory_space<vmem>>) attributes {dimension_semantics = [#tpu.dimension_semantics<parallel>, #tpu.dimension_semantics<parallel>, #tpu.dimension_semantics<parallel>], iteration_bounds = array<i64: 2, 3, 1>, scalar_prefetch = 0 : i64, scratch_operands = 0 : i64, tpu.core_type = #tpu.core_type<tc>, window_params = [{transform_indices = @transform_0, window_bounds = array<i64: 1, 1, 2, 128>}, {transform_indices = @transform_1, window_bounds = array<i64: 1, 1, 2, 128>}]} {
    %c0 = arith.constant 0 : index
    %c0_0 = arith.constant 0 : index
    %c0_1 = arith.constant 0 : index
    %c0_2 = arith.constant 0 : index
    %0 = vector.load %arg3[%c0, %c0_0, %c0_1, %c0_2] : memref<1x1x2x128xf32, #tpu.memory_space<vmem>>, vector<1x1x2x128xf32>
    %1 = vector.shape_cast %0 : vector<1x1x2x128xf32> to vector<2x128xf32>
    %c0_3 = arith.constant 0 : index
    %c0_4 = arith.constant 0 : index
    %c0_5 = arith.constant 0 : index
    %c0_6 = arith.constant 0 : index
    %2 = vector.load %arg4[%c0_3, %c0_4, %c0_5, %c0_6] : memref<1x1x2x128xf32, #tpu.memory_space<vmem>>, vector<1x1x2x128xf32>
    %3 = vector.shape_cast %2 : vector<1x1x2x128xf32> to vector<2x128xf32>
    %4 = vector.shape_cast %1 : vector<2x128xf32> to vector<1x1x2x128xf32>
    tpu.vector_store %arg4[%c0_3, %c0_4, %c0_5, %c0_6], %4 {strides = array<i32>} : memref<1x1x2x128xf32, #tpu.memory_space<vmem>>, vector<1x1x2x128xf32>,
    return
  }
  func.func @transform_0(%arg0: i32, %arg1: i32, %arg2: i32) -> (i32, i32, i32, i32) {
    %c2_i32 = arith.constant 2 : i32
    %0 = arith.subi %c2_i32, %arg1 : i32
    %c0_i32 = arith.constant 0 : i32
    %c0_i32_0 = arith.constant 0 : i32
    return %arg0, %0, %arg2, %c0_i32 : i32, i32, i32, i32
  }
  func.func @transform_1(%arg0: i32, %arg1: i32, %arg2: i32) -> (i32, i32, i32, i32) {
    %c0_i32 = arith.constant 0 : i32
    %c0_i32_0 = arith.constant 0 : i32
    return %arg0, %arg1, %arg2, %c0_i32 : i32, i32, i32, i32
  }
}

</mosaic_0001>

<llo_original>
// kernel: tpu_custom_call.1
$region0: #{tpu_custom_call.1}
  #allocation0 [shape = 'u32[]', space=smem, size = 0x4, offset = 0x4, fixed_abs, tag = 'smem constant byte address 0x4 - core index']
  #allocation1 [shape = 'u32[72,128]{1,0:T(1,128)}', space=vmem, size = 0x9000, scoped, tag = 'internal scratch']
  %s0 = inlined_call_operand.hbm [shape: f32[2,3,2,128], index: 0, kind: input, shape index: {}]
  %s1 = inlined_call_operand.hbm [shape: f32[2,3,2,128], index: 1, kind: output, shape index: {}]
  %s2 = sld [smem:[#allocation0]]
  $region41: #{tpu_custom_call.1} parent=0
    _
  %s4 = ssub.s32 1, %s2
  %s5 = scalar_select 0, %s4, %s2
  $region1: #{tpu_custom_call.1} parent=0
    #allocation2 [shape = 'u8[2048]{0}', space=vmem, size = 0x800, scoped, tag = 'input window, operand 0']
    #allocation3 [shape = 's32[2]{0}', space=sflag, size = 0x8, scoped, tag = 'scoped memory for tpu_custom_call.1']
    #allocation4 [shape = 's32[2]{0}', space=sflag, size = 0x8, scoped, tag = 'scoped memory for tpu_custom_call.1']
    #allocation5 [shape = 'u8[2048]{0}', space=vmem, size = 0x800, scoped, tag = 'output window, operand 0']
    %6 = vsyncpa [#allocation3], 0
    %s7 = scalar_lea.sflag [#allocation3], 1
    %8 = vsyncpa %s7, 0
    %9 = vsyncpa [#allocation4], 0
    %s10 = scalar_lea.sflag [#allocation4], 1
    %11 = vsyncpa %s10, 0
    loop: start=0, step=1, limit=8
    $region2: #{tpu_custom_call.1} parent=1 // loop_pre_header
      _
    $region3: #{tpu_custom_call.1} parent=1 // loop_header
      %s13 = sphi 0, %s17
      %p14 = scmp.ge.s32.totalorder %s13, 8
      %s20 = sphi 0, %s39
      %s21 = sphi 0, %s35
      %s22 = sphi 0, %s31
      %s23 = sphi 0, %s20
      %s24 = sphi 0, %s21
      %s25 = sphi 0, %s22
      %s26 = sphi 0, %s23
      %s27 = sphi 0, %s24
      %s28 = sphi 0, %s25
      %s48 = sphi 0, %s50
      %s51 = sphi 0, %s48
      %s52 = sphi 0, %s51
      %s68 = sphi 0, %s52
      %s78 = sphi 0, %s80
      %s81 = sphi 0, %s78
      %s82 = sphi 0, %s81
      %s98 = sphi 0, %s82
    $region4: #{tpu_custom_call.1} parent=1 // loop_header_branch
      %16 = sbr.rel (%p14) target = $region8
    $region5: #{tpu_custom_call.1} parent=1 // loop_body
      %s18 = ssub.s32 %s13, 1
      %s19 = ssub.s32 %s13, 2
      %s29 = sadd.s32 1, %s22
      %p30 = scmp.ge.s32.totalorder %s29, 1
      %s31 = scalar_select %p30, 0, %s29
      %s32 = sadd.s32 1, %s21
      %s33 = scalar_select %p30, %s32, %s21
      %p34 = scmp.ge.s32.totalorder %s33, 3
      %s35 = scalar_select %p34, 0, %s33
      %s36 = sadd.s32 1, %s20
      %s37 = scalar_select %p34, %s36, %s20
      %p38 = scmp.ge.s32.totalorder %s37, 2
      %s39 = scalar_select %p38, 0, %s37
      %s40 = ssub.s32 2, %s21
      %s41 = ssub.s32 2, %s35
      %s42 = ssub.s32 %s20, %s39
      %s43 = ssub.s32 %s40, %s41
      %s44 = sor.u32 %s42, %s43
      %s45 = ssub.s32 %s22, %s31
      %s46 = sor.u32 %s44, %s45
      %p47 = scmp.eq.s32.totalorder %s46, 0
      %s49 = sadd.s32 %s48, 1
      %s50 = scalar_select %p47, %s48, %s49
      %p53 = pneg %p47
      %p54 = scmp.eq.s32.totalorder %s13, 5
      %p55 = por %p53, %p54
      %p56 = scmp.ne.s32.totalorder %s48, %s51
      %p57 = scmp.eq.s32.totalorder %s13, 0
      %p58 = por %p56, %p57
      %p59 = scmp.ne.s32.totalorder %s48, %s51
      %p60 = scmp.eq.s32.totalorder %s18, 5
      %p61 = por %p59, %p60
      %p62 = scmp.ne.s32.totalorder %s51, %s52
      %p63 = scmp.eq.s32.totalorder %s18, 0
      %p64 = por %p62, %p63
      %p65 = scmp.ne.s32.totalorder %s51, %s52
      %p66 = scmp.eq.s32.totalorder %s19, 5
      %p67 = por %p65, %p66
      %p69 = scmp.ne.s32.totalorder %s52, %s68
      %p70 = scmp.eq.s32.totalorder %s19, 0
      %p71 = por %p69, %p70
      %s72 = ssub.s32 %s20, %s39
      %s73 = ssub.s32 %s21, %s35
      %s74 = sor.u32 %s72, %s73
      %s75 = ssub.s32 %s22, %s31
      %s76 = sor.u32 %s74, %s75
      %p77 = scmp.eq.s32.totalorder %s76, 0
      %s79 = sadd.s32 %s78, 1
      %s80 = scalar_select %p77, %s78, %s79
      %p83 = pneg %p77
      %p84 = scmp.eq.s32.totalorder %s13, 5
      %p85 = por %p83, %p84
      %p86 = scmp.ne.s32.totalorder %s78, %s81
      %p87 = scmp.eq.s32.totalorder %s13, 0
      %p88 = por %p86, %p87
      %p89 = scmp.ne.s32.totalorder %s78, %s81
      %p90 = scmp.eq.s32.totalorder %s18, 5
      %p91 = por %p89, %p90
      %p92 = scmp.ne.s32.totalorder %s81, %s82
      %p93 = scmp.eq.s32.totalorder %s18, 0
      %p94 = por %p92, %p93
      %p95 = scmp.ne.s32.totalorder %s81, %s82
      %p96 = scmp.eq.s32.totalorder %s19, 5
      %p97 = por %p95, %p96
      %p99 = scmp.ne.s32.totalorder %s82, %s98
      %p100 = scmp.eq.s32.totalorder %s19, 0
      %p101 = por %p99, %p100
      %p102 = scmp.le.s32.totalorder 1, %s13
      %p103 = scmp.lt.s32.totalorder %s13, 7
      %p104 = pnand %p102, %p103
      %p105 = pneg %p104
      // Predicated region
      $region9: #{tpu_custom_call.1} parent=5 // pred_check
        _
      $region10: #{tpu_custom_call.1} parent=5 // pred_check_branch
        %107 = sbr.rel (%p104) target = $region12
      $region11: #{tpu_custom_call.1} parent=5 // pred_region
        %s108 = ssub.s32 %s13, 1
      $region12: #{tpu_custom_call.1} parent=5 // pred_fallthru
        _
      %p109 = scmp.lt.s32.totalorder %s13, 6
      // Predicated region
      $region13: #{tpu_custom_call.1} parent=5 // pred_check
        %p110 = pneg %p109
      $region14: #{tpu_custom_call.1} parent=5 // pred_check_branch
        %112 = sbr.rel (%p110) target = $region16
      $region15: #{tpu_custom_call.1} parent=5 // pred_region
        // Predicated region
        $region17: #{tpu_custom_call.1} parent=15 // pred_check
          %p113 = pneg %p58
        $region18: #{tpu_custom_call.1} parent=15 // pred_check_branch
          %115 = sbr.rel (%p113) target = $region20
        $region19: #{tpu_custom_call.1} parent=15 // pred_region
          %s116 = sand.u32 %s48, 1
          %s117 = scalar_lea.sflag [#allocation3], %s116
          %s118 = sand.u32 %s48, 1
          %s119 = smul.addr %s118, 2
          %s120 = scalar_lea.vmem [#allocation2], %s119
          %s121 = ssub.s32 2, %s21
          %123 = vsyncadd %s117, 0
          %s124 = sadd.s32 %s22, %s121
          %s125 = smul.addr %s20, 3
          %s126 = sadd.s32 %s124, %s125
          %s127 = smul.addr %s126, 2
          %s128 = scalar_lea.hbm %s0, %s127
          %s130 = sshll.u32 %s128, 4
          %s131 = int_to_ptr.hbm [resolvable:$true] %s130
          %s132 = sshll.u32 %s120, 4
          %s133 = int_to_ptr.vmem [resolvable:$true] %s132
          %135 = dma.hbm_to_vmem [thread:$0]  %s131, 32, %s133, %s117
        $region20: #{tpu_custom_call.1} parent=15 // pred_fallthru
          _
      $region16: #{tpu_custom_call.1} parent=5 // pred_fallthru
        _
      %p136 = scmp.le.s32.totalorder 1, %s13
      %p137 = scmp.lt.s32.totalorder %s13, 7
      %p138 = pnand %p136, %p137
      %p139 = pneg %p138
      // Predicated region
      $region21: #{tpu_custom_call.1} parent=5 // pred_check
        _
      $region22: #{tpu_custom_call.1} parent=5 // pred_check_branch
        %141 = sbr.rel (%p138) target = $region24
      $region23: #{tpu_custom_call.1} parent=5 // pred_region
        %s142 = ssub.s32 %s13, 1
        %s143 = sand.u32 %s51, 1
        %s144 = scalar_lea.sflag [#allocation3], %s143
        %s145 = sand.u32 %s51, 1
        %s146 = smul.addr %s145, 2
        %s147 = scalar_lea.vmem [#allocation2], %s146
        // Predicated region
        $region25: #{tpu_custom_call.1} parent=23 // pred_check
          %p148 = pneg %p64
        $region26: #{tpu_custom_call.1} parent=23 // pred_check_branch
          %150 = sbr.rel (%p148) target = $region28
        $region27: #{tpu_custom_call.1} parent=23 // pred_region
          %152 = dma.done %s144, 32
        $region28: #{tpu_custom_call.1} parent=23 // pred_fallthru
          _
        %s153 = sand.u32 %s51, 1
        %s154 = scalar_lea.sflag [#allocation3], %s153
        %s155 = sand.u32 %s51, 1
        %s156 = smul.addr %s155, 2
        %s157 = scalar_lea.vmem [#allocation2], %s156
        %p158 = pneg %p64
        %p159 = pneg %p61
        %p160 = pneg %p94
        %p161 = pneg %p91
        %s162 = sand.u32 %s81, 1
        %s163 = scalar_lea.sflag [#allocation4], %s162
        %s164 = sand.u32 %s81, 1
        %s165 = smul.addr %s164, 2
        %s166 = scalar_lea.vmem [#allocation5], %s165
        %s167 = ssub.s32 2, %s24
        %v168 = vld [vmem:[%s147] sm:$0x3]
        %169 = vst [vmem:[%s166] sm:$0x3] %v168
        %s170 = sand.u32 %s81, 1
        %s171 = scalar_lea.sflag [#allocation4], %s170
        %s172 = sand.u32 %s81, 1
        %s173 = smul.addr %s172, 2
        %s174 = scalar_lea.vmem [#allocation5], %s173
        // Predicated region
        $region29: #{tpu_custom_call.1} parent=23 // pred_check
          %p175 = pneg %p91
        $region30: #{tpu_custom_call.1} parent=23 // pred_check_branch
          %177 = sbr.rel (%p175) target = $region32
        $region31: #{tpu_custom_call.1} parent=23 // pred_region
          %179 = vsyncadd %s171, 0
          %s180 = sadd.s32 %s25, %s24
          %s181 = smul.addr %s23, 3
          %s182 = sadd.s32 %s180, %s181
          %s183 = smul.addr %s182, 2
          %s184 = scalar_lea.hbm %s1, %s183
          %s186 = sshll.u32 %s174, 4
          %s187 = int_to_ptr.vmem [resolvable:$true] %s186
          %s188 = sshll.u32 %s184, 4
          %s189 = int_to_ptr.hbm [resolvable:$true] %s188
          %191 = dma.vmem_to_hbm [thread:$0]  %s187, 32, %s189, %s171
        $region32: #{tpu_custom_call.1} parent=23 // pred_fallthru
          _
      $region24: #{tpu_custom_call.1} parent=5 // pred_fallthru
        _
      %p192 = scmp.le.s32.totalorder 2, %s13
      // Predicated region
      $region33: #{tpu_custom_call.1} parent=5 // pred_check
        %p193 = pneg %p192
      $region34: #{tpu_custom_call.1} parent=5 // pred_check_branch
        %195 = sbr.rel (%p193) target = $region36
      $region35: #{tpu_custom_call.1} parent=5 // pred_region
        %s196 = ssub.s32 %s13, 2
        // Predicated region
        $region37: #{tpu_custom_call.1} parent=35 // pred_check
          %p197 = pneg %p97
        $region38: #{tpu_custom_call.1} parent=35 // pred_check_branch
          %199 = sbr.rel (%p197) target = $region40
        $region39: #{tpu_custom_call.1} parent=35 // pred_region
          %s200 = sand.u32 %s82, 1
          %s201 = scalar_lea.sflag [#allocation4], %s200
          %s202 = sand.u32 %s82, 1
          %s203 = smul.addr %s202, 2
          %s204 = scalar_lea.vmem [#allocation5], %s203
          %206 = dma.done %s201, 32
        $region40: #{tpu_custom_call.1} parent=35 // pred_fallthru
          _
      $region36: #{tpu_custom_call.1} parent=5 // pred_fallthru
        _
    $region6: #{tpu_custom_call.1} parent=1 // loop_footer
      %s17 = sadd.s32 1, %s13
    $region7: #{tpu_custom_call.1} parent=1 // loop_footer_branch
      %12 = sbr.rel target = $region3
    $region8: #{tpu_custom_call.1} parent=1 // loop_exit
      _
    %207 = vsyncpa [#allocation3], 1
    %s208 = scalar_lea.sflag [#allocation3], 1
    %209 = vsyncpa %s208, 1
    %210 = vsyncpa [#allocation4], 1
    %s211 = scalar_lea.sflag [#allocation4], 1
    %212 = vsyncpa %s211, 1

</llo_original>
